<compile_context>
chip_gen: v7x
topology: tpu7x:2x2x1
jax: 0.10.0
libtpu: 0.0.40
codegen_flags: <defaults>
</compile_context>

<pallas_src>
import jax
import jax.numpy as jnp
from jax.experimental import pallas as pl
from jax.experimental.pallas import tpu as pltpu


def _leaky_relu(x, slope=0.2):
    # For 0 < slope < 1, max(x, slope*x) == LeakyReLU(x): mul+max (2 VALU ops)
    # instead of cmp+mul+select (3).
    return jnp.maximum(x, slope * x)


def discriminator_kernel(xT_ref, w1_ref, b1_ref, w2_ref, b2_ref, w3_ref, b3_ref, o_ref):
    # Transposed layout: features on sublanes, batch on lanes.

    # Layer 1 (MXU): (H1, F) @ (F, T) -> (H1, T); bf16 operands, f32 accumulate.
    h1 = jnp.dot(w1_ref[...], xT_ref[...], preferred_element_type=jnp.float32) + b1_ref[...]
    h1 = _leaky_relu(h1)

    # Layer 2 (MXU): (H2, H1) @ (H1, T) -> (H2, T), f32.
    h2 = jnp.dot(w2_ref[...], h1, preferred_element_type=jnp.float32) + b2_ref[...]
    h2 = _leaky_relu(h2)

    # Layer 3 (64 -> 1): elementwise multiply (VPU) + sublane reduce (XLU);
    # an N=1 MXU pass would be almost entirely padding.
    logits = jnp.sum(h2 * w3_ref[...], axis=0, keepdims=True) + b3_ref[...]  # (1, T)

    # Sigmoid: exp and the (approx) reciprocal both land on the EUP slot.
    o_ref[...] = pl.reciprocal(1.0 + jnp.exp(-logits), approx=True).astype(o_ref.dtype)


def _round_up(x, m):
    return -(-x // m) * m


def discriminator_forward(x, params, *, batch_tile=8192, layer1_dtype=jnp.bfloat16):
    """x: (B, in_features) float32.  Returns (B, 1) float32."""
    w1, b1, w2, b2, w3, b3 = params
    B, F = x.shape
    H1 = w1.shape[1]
    H2 = w2.shape[1]
    OUT = w3.shape[1]
    assert OUT == 1

    # ---- tile / grid selection ------------------------------------------
    # Lane-dense tiles (multiples of 128) once the batch is non-trivial; large
    # tiles amortize per-step overhead, but aim for >= 4 grid steps on big
    # batches so megacore sharding and double-buffering have work to overlap.
    batch_tile = max(128, _round_up(batch_tile, 128))
    if B <= 128:
        tile = _round_up(max(B, 8), 8)                 # single tiny full-dim tile
    else:
        target = _round_up(-(-B // 4), 128)            # ~4 grid steps
        tile = min(batch_tile, max(512, target))       # never tiny tiles
        tile = min(tile, _round_up(B, 128))            # don't over-pad small B
    Bp = _round_up(B, tile)
    grid = (Bp // tile,)

    # ---- lane-dense (transposed) operands --------------------------------
    # bf16 x halves the dominant HBM stream; the cast/pad/transpose is eligible
    # for input fusion into the kernel's DMA (allow_input_fusion below).
    xT = jnp.pad(x.astype(layer1_dtype), ((0, Bp - B), (0, 0))).T   # (F, Bp)
    w1T = w1.T.astype(layer1_dtype)                                 # (H1, F)
    w2T = w2.T.astype(jnp.float32)                                  # (H2, H1)
    b1c = b1.reshape(H1, 1).astype(jnp.float32)                     # lane-broadcast
    b2c = b2.reshape(H2, 1).astype(jnp.float32)
    w3c = w3.reshape(H2, 1).astype(jnp.float32)
    b3c = b3.reshape(1, 1).astype(jnp.float32)

    def full(shape):
        return pl.BlockSpec(shape, lambda i: (0, 0))   # tiny weights: whole array per step

    out_t = pl.pallas_call(
        discriminator_kernel,
        out_shape=jax.ShapeDtypeStruct((1, Bp), jnp.float32),
        grid_spec=pltpu.PrefetchScalarGridSpec(
            num_scalar_prefetch=0,
            grid=grid,
            in_specs=[
                pl.BlockSpec((F, tile), lambda i: (0, i)),   # x tile (batch on lanes)
                full((H1, F)), full((H1, 1)),                # layer 1
                full((H2, H1)), full((H2, 1)),               # layer 2
                full((H2, 1)), full((1, 1)),                 # layer 3
            ],
            out_specs=pl.BlockSpec((1, tile), lambda i: (0, i)),  # lane-dense writeback
        ),
        compiler_params=pltpu.CompilerParams(
            dimension_semantics=("parallel",),          # shard batch grid across TCs
            vmem_limit_bytes=32 * 1024 * 1024,          # headroom for 8K-lane tiles
            allow_input_fusion=[True, False, False, False, False, False, False],
        ),
    )(xT, w1T, b1c, w2T, b2c, w3c, b3c)

    return out_t[0, :B].reshape(B, 1)


def init_params(key, in_features, h1=32, h2=64, out=1):
    """Deterministic init mimicking PyTorch Linear's U(-1/sqrt(fan_in), 1/sqrt(fan_in))."""
    ks = jax.random.split(key, 6)

    def lin(kw, kb, fan_in, fan_out):
        bound = 1.0 / jnp.sqrt(jnp.float32(fan_in))
        w = jax.random.uniform(kw, (fan_in, fan_out), jnp.float32, -bound, bound)
        b = jax.random.uniform(kb, (1, fan_out), jnp.float32, -bound, bound)
        return w, b

    w1, b1 = lin(ks[0], ks[1], in_features, h1)
    w2, b2 = lin(ks[2], ks[3], h1, h2)
    w3, b3 = lin(ks[4], ks[5], h2, out)
    return (w1, b1, w2, b2, w3, b3)


def reference_forward(x, params):
    w1, b1, w2, b2, w3, b3 = params
    h = _leaky_relu(x @ w1 + b1)
    h = _leaky_relu(h @ w2 + b2)
    z = h @ w3 + b3
    return 1.0 / (1.0 + jnp.exp(-z))


if __name__ == "__main__":
    latent_dim = 8
    conditional_param_count = 4
    in_features = latent_dim + conditional_param_count

    key = jax.random.PRNGKey(0)
    k_x, k_p, k_x2 = jax.random.split(key, 3)
    params = init_params(k_p, in_features)

    # Tolerance is loosened vs. pure-f32 because layer 1 runs with bf16 operands
    # (f32 accumulation) and the sigmoid uses the EUP approximate reciprocal.
    TOL = 1e-2

    # Small batch: single-tile path (grid=(1,)).
    x = jax.random.normal(k_x, (16, in_features), dtype=jnp.float32)
    out = jax.block_until_ready(discriminator_forward(x, params))
    ref = reference_forward(x, params)
    assert out.shape == (16, 1), out.shape
    assert jnp.allclose(out, ref, atol=TOL, rtol=0.0), "mismatch vs pure-JAX reference (small batch)"

    # Larger, non-multiple batch: tiled + padded, lane-dense writeback path.
    x2 = jax.random.normal(k_x2, (300, in_features), dtype=jnp.float32)
    out2 = jax.block_until_ready(discriminator_forward(x2, params, batch_tile=128))
    ref2 = reference_forward(x2, params)
    assert out2.shape == (300, 1), out2.shape
    assert jnp.allclose(out2, ref2, atol=TOL, rtol=0.0), "mismatch vs pure-JAX reference (tiled batch)"

    print("KERNEL_OK")
</pallas_src>

<mosaic_0001>
module attributes {stable_mosaic.version = 11 : i64} {
  func.func @discriminator_kernel(%arg0: i32, %arg1: memref<12x16xbf16, #tpu.memory_space<vmem>>, %arg2: memref<32x12xbf16, #tpu.memory_space<vmem>>, %arg3: memref<32x1xf32, #tpu.memory_space<vmem>>, %arg4: memref<64x32xf32, #tpu.memory_space<vmem>>, %arg5: memref<64x1xf32, #tpu.memory_space<vmem>>, %arg6: memref<64x1xf32, #tpu.memory_space<vmem>>, %arg7: memref<1x1xf32, #tpu.memory_space<vmem>>, %arg8: memref<1x16xf32, #tpu.memory_space<vmem>>) attributes {dimension_semantics = [#tpu.dimension_semantics<parallel>], iteration_bounds = array<i64: 1>, scalar_prefetch = 0 : i64, scratch_operands = 0 : i64, tpu.core_type = #tpu.core_type<tc>, window_params = [{transform_indices = @transform_0, window_bounds = array<i64: 12, 16>}, {pipeline_mode = #tpu.pipeline_mode<synchronous>, transform_indices = @transform_1, window_bounds = array<i64: 32, 12>}, {pipeline_mode = #tpu.pipeline_mode<synchronous>, transform_indices = @transform_2, window_bounds = array<i64: 32, 1>}, {pipeline_mode = #tpu.pipeline_mode<synchronous>, transform_indices = @transform_3, window_bounds = array<i64: 64, 32>}, {pipeline_mode = #tpu.pipeline_mode<synchronous>, transform_indices = @transform_4, window_bounds = array<i64: 64, 1>}, {pipeline_mode = #tpu.pipeline_mode<synchronous>, transform_indices = @transform_5, window_bounds = array<i64: 64, 1>}, {pipeline_mode = #tpu.pipeline_mode<synchronous>, transform_indices = @transform_6, window_bounds = array<i64: 1, 1>}, {transform_indices = @transform_7, window_bounds = array<i64: 1, 16>}]} {
    %c0 = arith.constant 0 : index
    %c0_0 = arith.constant 0 : index
    %0 = vector.load %arg2[%c0, %c0_0] : memref<32x12xbf16, #tpu.memory_space<vmem>>, vector<32x12xbf16>
    %c0_1 = arith.constant 0 : index
    %c0_2 = arith.constant 0 : index
    %1 = vector.load %arg1[%c0_1, %c0_2] : memref<12x16xbf16, #tpu.memory_space<vmem>>, vector<12x16xbf16>
    %cst = arith.constant dense<0.000000e+00> : vector<32x16xf32>
    %2 = tpu.matmul %0, %1, %cst {dimension_numbers = #tpu.dot_dimension_numbers<[1], [0], [0], [1], [0, 0, 1, 1], [], []>} : vector<32x12xbf16>, vector<12x16xbf16>, vector<32x16xf32> -> vector<32x16xf32>
    %c0_3 = arith.constant 0 : index
    %c0_4 = arith.constant 0 : index
    %3 = vector.load %arg3[%c0_3, %c0_4] : memref<32x1xf32, #tpu.memory_space<vmem>>, vector<32x1xf32>
    %4 = vector.broadcast %3 : vector<32x1xf32> to vector<32x16xf32>
    %5 = arith.addf %2, %4 : vector<32x16xf32>
    %cst_5 = arith.constant 2.000000e-01 : f32
    %6 = vector.broadcast %cst_5 : f32 to vector<32x16xf32>
    %7 = arith.mulf %6, %5 : vector<32x16xf32>
    %8 = arith.maximumf %5, %7 : vector<32x16xf32>
    %c0_6 = arith.constant 0 : index
    %c0_7 = arith.constant 0 : index
    %9 = vector.load %arg4[%c0_6, %c0_7] : memref<64x32xf32, #tpu.memory_space<vmem>>, vector<64x32xf32>
    %cst_8 = arith.constant dense<0.000000e+00> : vector<64x16xf32>
    %10 = tpu.matmul %9, %8, %cst_8 {dimension_numbers = #tpu.dot_dimension_numbers<[1], [0], [0], [1], [0, 0, 1, 1], [], []>} : vector<64x32xf32>, vector<32x16xf32>, vector<64x16xf32> -> vector<64x16xf32>
    %c0_9 = arith.constant 0 : index
    %c0_10 = arith.constant 0 : index
    %11 = vector.load %arg5[%c0_9, %c0_10] : memref<64x1xf32, #tpu.memory_space<vmem>>, vector<64x1xf32>
    %12 = vector.broadcast %11 : vector<64x1xf32> to vector<64x16xf32>
    %13 = arith.addf %10, %12 : vector<64x16xf32>
    %cst_11 = arith.constant 2.000000e-01 : f32
    %14 = vector.broadcast %cst_11 : f32 to vector<64x16xf32>
    %15 = arith.mulf %14, %13 : vector<64x16xf32>
    %16 = arith.maximumf %13, %15 : vector<64x16xf32>
    %c0_12 = arith.constant 0 : index
    %c0_13 = arith.constant 0 : index
    %17 = vector.load %arg6[%c0_12, %c0_13] : memref<64x1xf32, #tpu.memory_space<vmem>>, vector<64x1xf32>
    %18 = vector.broadcast %17 : vector<64x1xf32> to vector<64x16xf32>
    %19 = arith.mulf %16, %18 : vector<64x16xf32>
    %cst_14 = arith.constant dense<0.000000e+00> : vector<16xf32>
    %20 = vector.multi_reduction <add>, %19, %cst_14 [0] : vector<64x16xf32> to vector<16xf32>
    %21 = vector.shape_cast %20 : vector<16xf32> to vector<1x16xf32>
    %c0_15 = arith.constant 0 : index
    %c0_16 = arith.constant 0 : index
    %22 = vector.load %arg7[%c0_15, %c0_16] : memref<1x1xf32, #tpu.memory_space<vmem>>, vector<1x1xf32>
    %23 = vector.broadcast %22 : vector<1x1xf32> to vector<1x16xf32>
    %24 = arith.addf %21, %23 : vector<1x16xf32>
    %cst_17 = arith.constant 0.000000e+00 : f32
    %25 = vector.broadcast %cst_17 : f32 to vector<1x16xf32>
    %26 = arith.subf %25, %24 : vector<1x16xf32>
    %27 = math.exp %26 : vector<1x16xf32>
    %cst_18 = arith.constant 1.000000e+00 : f32
    %28 = vector.broadcast %cst_18 : f32 to vector<1x16xf32>
    %29 = arith.addf %28, %27 : vector<1x16xf32>
    %30 = tpu.reciprocal %29 {approx = true} : vector<1x16xf32> -> vector<1x16xf32>
    %c0_19 = arith.constant 0 : index
    %c0_20 = arith.constant 0 : index
    %31 = vector.load %arg8[%c0_19, %c0_20] : memref<1x16xf32, #tpu.memory_space<vmem>>, vector<1x16xf32>
    tpu.vector_store %arg8[%c0_19, %c0_20], %30 {strides = array<i32>} : memref<1x16xf32, #tpu.memory_space<vmem>>, vector<1x16xf32>,
    return
  }
  func.func @transform_0(%arg0: i32) -> (i32, i32) {
    %c0_i32 = arith.constant 0 : i32
    %c0_i32_0 = arith.constant 0 : i32
    return %c0_i32, %arg0 : i32, i32
  }
  func.func @transform_1(%arg0: i32) -> (i32, i32) {
    %c0_i32 = arith.constant 0 : i32
    %c0_i32_0 = arith.constant 0 : i32
    %c0_i32_1 = arith.constant 0 : i32
    return %c0_i32, %c0_i32_0 : i32, i32
  }
  func.func @transform_2(%arg0: i32) -> (i32, i32) {
    %c0_i32 = arith.constant 0 : i32
    %c0_i32_0 = arith.constant 0 : i32
    %c0_i32_1 = arith.constant 0 : i32
    return %c0_i32, %c0_i32_0 : i32, i32
  }
  func.func @transform_3(%arg0: i32) -> (i32, i32) {
    %c0_i32 = arith.constant 0 : i32
    %c0_i32_0 = arith.constant 0 : i32
    %c0_i32_1 = arith.constant 0 : i32
    return %c0_i32, %c0_i32_0 : i32, i32
  }
  func.func @transform_4(%arg0: i32) -> (i32, i32) {
    %c0_i32 = arith.constant 0 : i32
    %c0_i32_0 = arith.constant 0 : i32
    %c0_i32_1 = arith.constant 0 : i32
    return %c0_i32, %c0_i32_0 : i32, i32
  }
  func.func @transform_5(%arg0: i32) -> (i32, i32) {
    %c0_i32 = arith.constant 0 : i32
    %c0_i32_0 = arith.constant 0 : i32
    %c0_i32_1 = arith.constant 0 : i32
    return %c0_i32, %c0_i32_0 : i32, i32
  }
  func.func @transform_6(%arg0: i32) -> (i32, i32) {
    %c0_i32 = arith.constant 0 : i32
    %c0_i32_0 = arith.constant 0 : i32
    %c0_i32_1 = arith.constant 0 : i32
    return %c0_i32, %c0_i32_0 : i32, i32
  }
  func.func @transform_7(%arg0: i32) -> (i32, i32) {
    %c0_i32 = arith.constant 0 : i32
    %c0_i32_0 = arith.constant 0 : i32
    return %c0_i32, %arg0 : i32, i32
  }
}

</mosaic_0001>

<llo_original>
// kernel: tpu_custom_call.1
$region0: #{tpu_custom_call.1}
  #allocation0 [shape = 'u32[]', space=smem, size = 0x4, offset = 0x4, fixed_abs, tag = 'smem constant byte address 0x4 - core index']
  #allocation1 [shape = 'u32[144,128]{1,0:T(1,128)}', space=vmem, size = 0x12000, scoped, tag = 'internal scratch']
  #allocation2 [shape = 'f32[1,1]{1,0:T(1,128)S(1)}', space=vmem, size = 0x200, scoped, tag = 'scoped memory for tpu_custom_call.1']
  %s0 = inlined_call_operand.vmem [shape: bf16[12,16], index: 0, kind: input, shape index: {}]
  %s1 = inlined_call_operand.vmem [shape: bf16[32,12], index: 1, kind: input, shape index: {}]
  %s2 = inlined_call_operand.vmem [shape: f32[32,1], index: 2, kind: input, shape index: {}]
  %s3 = inlined_call_operand.vmem [shape: f32[64,32], index: 3, kind: input, shape index: {}]
  %s4 = inlined_call_operand.vmem [shape: f32[64,1], index: 4, kind: input, shape index: {}]
  %s5 = inlined_call_operand.vmem [shape: f32[64,1], index: 5, kind: input, shape index: {}]
  %s6 = inlined_call_operand.<no memory space> [shape: f32[1,1], index: 6, kind: input, shape index: {}]
  %s7 = inlined_call_operand.hbm [shape: f32[1,16], index: 7, kind: output, shape index: {}]
  %s8 = sld [smem:[#allocation0]]
  $region38: #{tpu_custom_call.1} parent=0
    _
  %s10 = ssub.s32 1, %s8
  %s11 = scalar_select 0, %s10, %s8
  %v12 = vstv %s6
  %13 = vst [vmem:[#allocation2] sm:$0x1] %v12
  $region1: #{tpu_custom_call.1} parent=0
    #allocation3 [shape = 'u8[512]{0}', space=vmem, size = 0x400, scoped, tag = 'output window, operand 0, single buffered']
    #allocation4 [shape = 's32[1]{0}', space=sflag, size = 0x4, scoped, tag = 'scoped memory for tpu_custom_call.1']
    %14 = vsyncpa [#allocation4], 0
    // Predicated region
    $region2: #{tpu_custom_call.1} parent=1 // pred_check
      _
    $region3: #{tpu_custom_call.1} parent=1 // pred_check_branch
      %16 = sbr.rel (0) target = $region5
    $region4: #{tpu_custom_call.1} parent=1 // pred_region
      _
    $region5: #{tpu_custom_call.1} parent=1 // pred_fallthru
      _
    // Predicated region
    $region6: #{tpu_custom_call.1} parent=1 // pred_check
      _
    $region7: #{tpu_custom_call.1} parent=1 // pred_check_branch
      %18 = sbr.rel (0) target = $region9
    $region8: #{tpu_custom_call.1} parent=1 // pred_region
      _
    $region9: #{tpu_custom_call.1} parent=1 // pred_fallthru
      _
    // Predicated region
    $region10: #{tpu_custom_call.1} parent=1 // pred_check
      _
    $region11: #{tpu_custom_call.1} parent=1 // pred_check_branch
      %20 = sbr.rel (0) target = $region13
    $region12: #{tpu_custom_call.1} parent=1 // pred_region
      _
    $region13: #{tpu_custom_call.1} parent=1 // pred_fallthru
      _
    // Predicated region
    $region14: #{tpu_custom_call.1} parent=1 // pred_check
      _
    $region15: #{tpu_custom_call.1} parent=1 // pred_check_branch
      %22 = sbr.rel (0) target = $region17
    $region16: #{tpu_custom_call.1} parent=1 // pred_region
      _
    $region17: #{tpu_custom_call.1} parent=1 // pred_fallthru
      _
    // Predicated region
    $region18: #{tpu_custom_call.1} parent=1 // pred_check
      _
    $region19: #{tpu_custom_call.1} parent=1 // pred_check_branch
      %24 = sbr.rel (0) target = $region21
    $region20: #{tpu_custom_call.1} parent=1 // pred_region
      _
    $region21: #{tpu_custom_call.1} parent=1 // pred_fallthru
      _
    // Predicated region
    $region22: #{tpu_custom_call.1} parent=1 // pred_check
      _
    $region23: #{tpu_custom_call.1} parent=1 // pred_check_branch
      %26 = sbr.rel (0) target = $region25
    $region24: #{tpu_custom_call.1} parent=1 // pred_region
      _
    $region25: #{tpu_custom_call.1} parent=1 // pred_fallthru
      _
    // Predicated region
    $region26: #{tpu_custom_call.1} parent=1 // pred_check
      _
    $region27: #{tpu_custom_call.1} parent=1 // pred_check_branch
      %28 = sbr.rel (0) target = $region29
    $region28: #{tpu_custom_call.1} parent=1 // pred_region
      _
    $region29: #{tpu_custom_call.1} parent=1 // pred_fallthru
      _
    %v30 = vld [vmem:[%s1] sm:$0xf]
    %v31 = vld [vmem:[%s1 + $0x4] sm:$0xf]
    %v32 = vld [vmem:[%s1 + $0x8] sm:$0xf]
    %v33 = vld [vmem:[%s1 + $0xc] sm:$0xf]
    %v34 = vld [vmem:[%s0] sm:$0xf]
    %v35 = vld [vmem:[%s0 + $0x4] sm:$0x3]
    %v36 = vld [vmem:[%s2] sm:$0xff]
    %v37 = vld [vmem:[%s2 + $0x8] sm:$0xff]
    %v38 = vld [vmem:[%s2 + $0x10] sm:$0xff]
    %v39 = vld [vmem:[%s2 + $0x18] sm:$0xff]
    %41 = vset.pattern.permute.xlu0 0
    %42 = vperm.xlu0 %41, %v36
    %v43 = vpop.permute.xlu0 %42
    %46 = vset.pattern.permute.xlu0 0
    %47 = vperm.xlu0 %46, %v37
    %v48 = vpop.permute.xlu0 %47
    %51 = vset.pattern.permute.xlu0 0
    %52 = vperm.xlu0 %51, %v38
    %v53 = vpop.permute.xlu0 %52
    %56 = vset.pattern.permute.xlu0 0
    %57 = vperm.xlu0 %56, %v39
    %v58 = vpop.permute.xlu0 %57
    %v64 = vunpack.c.l.b16 %v30
    %v65 = vunpack.c.l.b16 %v31
    %v66 = vunpack.c.l.b16 %v32
    %v67 = vunpack.c.l.b16 %v33
    %v68 = vpack.c.b16 %v65, %v64
    %v69 = vpack.c.b16 %v67, %v66
    %v72 = vunpack.c.l.b16 %v34
    %v73 = vunpack.c.l.b16 %v35
    %v74 = vpack.c.b16 %v73, %v72
    %vm75 = vcmask 97280
    %v77 = vsel %vm75, %v68, 0
    %v80 = vsel %vm75, %v69, 0
    %vm82 = vcmask 1045504
    %v84 = vsel %vm82, %v74, 0
    %86 = vmatprep.subr.bf16.mxu0 0
    %87 = vmatpush1.bf16.msra.mxu0 %v84
    %88 = vmatprep.subr.bf16.mxu0 0
    %89 = vmatpush1.bf16.msra.mxu0 0
    %90 = vmatprep.subr.bf16.mxu0 0
    %91 = vmatpush1.bf16.msra.mxu0 0
    %92 = vmatprep.subr.bf16.mxu0 0
    %93 = vmatpush1.bf16.msra.mxu0 0
    %94 = vmatprep.subr.bf16.mxu0 0
    %95 = vmatpush1.bf16.msra.mxu0 0
    %96 = vmatprep.subr.bf16.mxu0 0
    %97 = vmatpush1.bf16.msra.mxu0 0
    %98 = vmatprep.subr.bf16.mxu0 0
    %99 = vmatpush1.bf16.msra.mxu0 0
    %100 = vmatprep.subr.bf16.mxu0 0
    %101 = vmatpush1.bf16.msra.mxu0 0
    %102 = vmatprep.subr.bf16.mxu0 0
    %103 = vmatpush1.bf16.msra.mxu0 0
    %104 = vmatprep.subr.bf16.mxu0 0
    %105 = vmatpush1.bf16.msra.mxu0 0
    %106 = vmatprep.subr.bf16.mxu0 0
    %107 = vmatpush1.bf16.msra.mxu0 0
    %108 = vmatprep.subr.bf16.mxu0 0
    %109 = vmatpush1.bf16.msra.mxu0 0
    %110 = vmatprep.subr.bf16.mxu0 0
    %111 = vmatpush1.bf16.msra.mxu0 0
    %112 = vmatprep.subr.bf16.mxu0 0
    %113 = vmatpush1.bf16.msra.mxu0 0
    %114 = vmatprep.subr.bf16.mxu0 0
    %115 = vmatpush1.bf16.msra.mxu0 0
    %116 = vmatprep.subr.bf16.mxu0 0
    %117 = vmatpush1.bf16.msra.mxu0 0
    %118 = vmatprep.mubr.bf16.mxu0 0
    %119 = vmatmul.mubr.bf16.gmra.mrb[0].mxu0 %v77
    %v120 = vpop.f32.mrb[0].mxu0
    %v121 = vadd.f32 %v43, %v120
    %v122 = vpop.f32.mrb[0].mxu0
    %v123 = vpop.f32.mrb[0].mxu0
    %v124 = vadd.f32 %v48, %v123
    %v125 = vpop.f32.mrb[0].mxu0
    %126 = vmatprep.mubr.bf16.mxu0 0
    %127 = vmatmul.mubr.bf16.gmra.mrb[0].mxu0 %v80
    %v128 = vpop.f32.mrb[0].mxu0
    %v129 = vadd.f32 %v53, %v128
    %v130 = vpop.f32.mrb[0].mxu0
    %v131 = vpop.f32.mrb[0].mxu0
    %v132 = vadd.f32 %v58, %v131
    %v133 = vpop.f32.mrb[0].mxu0
    %134 = vdwg.mxu0
    %v135 = vmul.f32 %v121, 0.2
    %v136 = vmul.f32 %v124, 0.2
    %v137 = vmul.f32 %v129, 0.2
    %v138 = vmul.f32 %v132, 0.2
    %v139 = vmax.f32 %v121, %v135
    %v140 = vmax.f32 %v124, %v136
    %v141 = vmax.f32 %v129, %v137
    %v142 = vmax.f32 %v132, %v138
    %v143 = vld [vmem:[%s3] sm:$0xff]
    %v144 = vld [vmem:[%s3 + $0x8] sm:$0xff]
    %v145 = vld [vmem:[%s3 + $0x10] sm:$0xff]
    %v146 = vld [vmem:[%s3 + $0x18] sm:$0xff]
    %v147 = vld [vmem:[%s3 + $0x20] sm:$0xff]
    %v148 = vld [vmem:[%s3 + $0x28] sm:$0xff]
    %v149 = vld [vmem:[%s3 + $0x30] sm:$0xff]
    %v150 = vld [vmem:[%s3 + $0x38] sm:$0xff]
    %v151 = vld [vmem:[%s4] sm:$0xff]
    %v152 = vld [vmem:[%s4 + $0x8] sm:$0xff]
    %v153 = vld [vmem:[%s4 + $0x10] sm:$0xff]
    %v154 = vld [vmem:[%s4 + $0x18] sm:$0xff]
    %v155 = vld [vmem:[%s4 + $0x20] sm:$0xff]
    %v156 = vld [vmem:[%s4 + $0x28] sm:$0xff]
    %v157 = vld [vmem:[%s4 + $0x30] sm:$0xff]
    %v158 = vld [vmem:[%s4 + $0x38] sm:$0xff]
    %160 = vset.pattern.permute.xlu0 0
    %161 = vperm.xlu0 %160, %v151
    %v162 = vpop.permute.xlu0 %161
    %165 = vset.pattern.permute.xlu0 0
    %166 = vperm.xlu0 %165, %v152
    %v167 = vpop.permute.xlu0 %166
    %170 = vset.pattern.permute.xlu0 0
    %171 = vperm.xlu0 %170, %v153
    %v172 = vpop.permute.xlu0 %171
    %175 = vset.pattern.permute.xlu0 0
    %176 = vperm.xlu0 %175, %v154
    %v177 = vpop.permute.xlu0 %176
    %180 = vset.pattern.permute.xlu0 0
    %181 = vperm.xlu0 %180, %v155
    %v182 = vpop.permute.xlu0 %181
    %185 = vset.pattern.permute.xlu0 0
    %186 = vperm.xlu0 %185, %v156
    %v187 = vpop.permute.xlu0 %186
    %190 = vset.pattern.permute.xlu0 0
    %191 = vperm.xlu0 %190, %v157
    %v192 = vpop.permute.xlu0 %191
    %195 = vset.pattern.permute.xlu0 0
    %196 = vperm.xlu0 %195, %v158
    %v197 = vpop.permute.xlu0 %196
    %vm199 = vcmask 261120
    %v201 = vsel %vm199, %v143, 0
    %v204 = vsel %vm199, %v144, 0
    %v207 = vsel %vm199, %v145, 0
    %v210 = vsel %vm199, %v146, 0
    %v213 = vsel %vm199, %v147, 0
    %v216 = vsel %vm199, %v148, 0
    %v219 = vsel %vm199, %v149, 0
    %v222 = vsel %vm199, %v150, 0
    %224 = vmatprep.subr.mxu0 0.0
    %225 = vmatpush1.msra.mxu0 %v139
    %226 = vmatprep.subr.mxu0 0.0
    %227 = vmatpush1.msra.mxu0 %v140
    %228 = vmatprep.subr.mxu0 0.0
    %229 = vmatpush1.msra.mxu0 %v141
    %230 = vmatprep.subr.mxu0 0.0
    %231 = vmatpush1.msra.mxu0 %v142
    %232 = vmatprep.subr.mxu0 0.0
    %233 = vmatpush1.msra.mxu0 0.0
    %234 = vmatprep.subr.mxu0 0.0
    %235 = vmatpush1.msra.mxu0 0.0
    %236 = vmatprep.subr.mxu0 0.0
    %237 = vmatpush1.msra.mxu0 0.0
    %238 = vmatprep.subr.mxu0 0.0
    %239 = vmatpush1.msra.mxu0 0.0
    %240 = vmatprep.subr.mxu0 0.0
    %241 = vmatpush1.msra.mxu0 0.0
    %242 = vmatprep.subr.mxu0 0.0
    %243 = vmatpush1.msra.mxu0 0.0
    %244 = vmatprep.subr.mxu0 0.0
    %245 = vmatpush1.msra.mxu0 0.0
    %246 = vmatprep.subr.mxu0 0.0
    %247 = vmatpush1.msra.mxu0 0.0
    %248 = vmatprep.subr.mxu0 0.0
    %249 = vmatpush1.msra.mxu0 0.0
    %250 = vmatprep.subr.mxu0 0.0
    %251 = vmatpush1.msra.mxu0 0.0
    %252 = vmatprep.subr.mxu0 0.0
    %253 = vmatpush1.msra.mxu0 0.0
    %254 = vmatprep.subr.mxu0 0.0
    %255 = vmatpush1.msra.mxu0 0.0
    %256 = vmatprep.subr.mxu0 0.0
    %257 = vmatpush1.msra.mxu0 0.0
    %258 = vmatprep.subr.mxu0 0.0
    %259 = vmatpush1.msra.mxu0 0.0
    %260 = vmatprep.subr.mxu0 0.0
    %261 = vmatpush1.msra.mxu0 0.0
    %262 = vmatprep.subr.mxu0 0.0
    %263 = vmatpush1.msra.mxu0 0.0
    %264 = vmatprep.subr.mxu0 0.0
    %265 = vmatpush1.msra.mxu0 0.0
    %266 = vmatprep.subr.mxu0 0.0
    %267 = vmatpush1.msra.mxu0 0.0
    %268 = vmatprep.subr.mxu0 0.0
    %269 = vmatpush1.msra.mxu0 0.0
    %270 = vmatprep.subr.mxu0 0.0
    %271 = vmatpush1.msra.mxu0 0.0
    %272 = vmatprep.subr.mxu0 0.0
    %273 = vmatpush1.msra.mxu0 0.0
    %274 = vmatprep.subr.mxu0 0.0
    %275 = vmatpush1.msra.mxu0 0.0
    %276 = vmatprep.subr.mxu0 0.0
    %277 = vmatpush1.msra.mxu0 0.0
    %278 = vmatprep.subr.mxu0 0.0
    %279 = vmatpush1.msra.mxu0 0.0
    %280 = vmatprep.subr.mxu0 0.0
    %281 = vmatpush1.msra.mxu0 0.0
    %282 = vmatprep.subr.mxu0 0.0
    %283 = vmatpush1.msra.mxu0 0.0
    %284 = vmatprep.subr.mxu0 0.0
    %285 = vmatpush1.msra.mxu0 0.0
    %286 = vmatprep.subr.mxu0 0.0
    %287 = vmatpush1.msra.mxu0 0.0
    %288 = vmatprep.mubr.f32.mxu0 0.0
    %289 = vmatmul.mubr.f32.gmra.mrb[0].mxu0 %v201
    %v290 = vpop.f32.mrb[0].mxu0
    %v291 = vadd.f32 %v162, %v290
    %v292 = vpop.f32.mrb[0].mxu0
    %293 = vmatprep.mubr.f32.mxu0 0.0
    %294 = vmatmul.mubr.f32.gmra.mrb[0].mxu0 %v204
    %v295 = vpop.f32.mrb[0].mxu0
    %v296 = vadd.f32 %v167, %v295
    %v297 = vpop.f32.mrb[0].mxu0
    %298 = vmatprep.mubr.f32.mxu0 0.0
    %299 = vmatmul.mubr.f32.gmra.mrb[0].mxu0 %v207
    %v300 = vpop.f32.mrb[0].mxu0
    %v301 = vadd.f32 %v172, %v300
    %v302 = vpop.f32.mrb[0].mxu0
    %303 = vmatprep.mubr.f32.mxu0 0.0
    %304 = vmatmul.mubr.f32.gmra.mrb[0].mxu0 %v210
    %v305 = vpop.f32.mrb[0].mxu0
    %v306 = vadd.f32 %v177, %v305
    %v307 = vpop.f32.mrb[0].mxu0
    %308 = vmatprep.mubr.f32.mxu0 0.0
    %309 = vmatmul.mubr.f32.gmra.mrb[0].mxu0 %v213
    %v310 = vpop.f32.mrb[0].mxu0
    %v311 = vadd.f32 %v182, %v310
    %v312 = vpop.f32.mrb[0].mxu0
    %313 = vmatprep.mubr.f32.mxu0 0.0
    %314 = vmatmul.mubr.f32.gmra.mrb[0].mxu0 %v216
    %v315 = vpop.f32.mrb[0].mxu0
    %v316 = vadd.f32 %v187, %v315
    %v317 = vpop.f32.mrb[0].mxu0
    %318 = vmatprep.mubr.f32.mxu0 0.0
    %319 = vmatmul.mubr.f32.gmra.mrb[0].mxu0 %v219
    %v320 = vpop.f32.mrb[0].mxu0
    %v321 = vadd.f32 %v192, %v320
    %v322 = vpop.f32.mrb[0].mxu0
    %323 = vmatprep.mubr.f32.mxu0 0.0
    %324 = vmatmul.mubr.f32.gmra.mrb[0].mxu0 %v222
    %v325 = vpop.f32.mrb[0].mxu0
    %v326 = vadd.f32 %v197, %v325
    %v327 = vpop.f32.mrb[0].mxu0
    %328 = vdwg.mxu0
    %v329 = vmul.f32 %v291, 0.2
    %v330 = vmul.f32 %v296, 0.2
    %v331 = vmul.f32 %v301, 0.2
    %v332 = vmul.f32 %v306, 0.2
    %v333 = vmul.f32 %v311, 0.2
    %v334 = vmul.f32 %v316, 0.2
    %v335 = vmul.f32 %v321, 0.2
    %v336 = vmul.f32 %v326, 0.2
    %v337 = vmax.f32 %v291, %v329
    %v338 = vmax.f32 %v296, %v330
    %v339 = vmax.f32 %v301, %v331
    %v340 = vmax.f32 %v306, %v332
    %v341 = vmax.f32 %v311, %v333
    %v342 = vmax.f32 %v316, %v334
    %v343 = vmax.f32 %v321, %v335
    %v344 = vmax.f32 %v326, %v336
    %v345 = vld [vmem:[%s5] sm:$0xff]
    %v346 = vld [vmem:[%s5 + $0x8] sm:$0xff]
    %v347 = vld [vmem:[%s5 + $0x10] sm:$0xff]
    %v348 = vld [vmem:[%s5 + $0x18] sm:$0xff]
    %v349 = vld [vmem:[%s5 + $0x20] sm:$0xff]
    %v350 = vld [vmem:[%s5 + $0x28] sm:$0xff]
    %v351 = vld [vmem:[%s5 + $0x30] sm:$0xff]
    %v352 = vld [vmem:[%s5 + $0x38] sm:$0xff]
    %354 = vset.pattern.permute.xlu0 0
    %355 = vperm.xlu0 %354, %v345
    %v356 = vpop.permute.xlu0 %355
    %359 = vset.pattern.permute.xlu0 0
    %360 = vperm.xlu0 %359, %v346
    %v361 = vpop.permute.xlu0 %360
    %364 = vset.pattern.permute.xlu0 0
    %365 = vperm.xlu0 %364, %v347
    %v366 = vpop.permute.xlu0 %365
    %369 = vset.pattern.permute.xlu0 0
    %370 = vperm.xlu0 %369, %v348
    %v371 = vpop.permute.xlu0 %370
    %374 = vset.pattern.permute.xlu0 0
    %375 = vperm.xlu0 %374, %v349
    %v376 = vpop.permute.xlu0 %375
    %379 = vset.pattern.permute.xlu0 0
    %380 = vperm.xlu0 %379, %v350
    %v381 = vpop.permute.xlu0 %380
    %384 = vset.pattern.permute.xlu0 0
    %385 = vperm.xlu0 %384, %v351
    %v386 = vpop.permute.xlu0 %385
    %389 = vset.pattern.permute.xlu0 0
    %390 = vperm.xlu0 %389, %v352
    %v391 = vpop.permute.xlu0 %390
    %v393 = vmul.f32 %v337, %v356
    %v394 = vmul.f32 %v338, %v361
    %v395 = vmul.f32 %v339, %v366
    %v396 = vmul.f32 %v340, %v371
    %v397 = vmul.f32 %v341, %v376
    %v398 = vmul.f32 %v342, %v381
    %v399 = vmul.f32 %v343, %v386
    %v400 = vmul.f32 %v344, %v391
    %vm401 = vcmask 130048
    %v402 = vsel %vm401, %v393, 0.0
    %v403 = vsel %vm401, %v394, 0.0
    %v404 = vadd.f32 %v402, %v403
    %v405 = vsel %vm401, %v395, 0.0
    %v406 = vadd.f32 %v404, %v405
    %v407 = vsel %vm401, %v396, 0.0
    %v408 = vadd.f32 %v406, %v407
    %v409 = vsel %vm401, %v397, 0.0
    %v410 = vadd.f32 %v408, %v409
    %v411 = vsel %vm401, %v398, 0.0
    %v412 = vadd.f32 %v410, %v411
    %v413 = vsel %vm401, %v399, 0.0
    %v414 = vadd.f32 %v412, %v413
    %v415 = vsel %vm401, %v400, 0.0
    %v416 = vadd.f32 %v414, %v415
    %v417 = vrot.slane %v416, 4
    %v418 = vadd.f32 %v416, %v417
    %v419 = vrot.slane %v418, 2
    %v420 = vadd.f32 %v418, %v419
    %v421 = vrot.slane %v420, 1
    %v422 = vadd.f32 %v420, %v421
    %v423 = vld [vmem:[#allocation2] sm:$0x1]
    %425 = vset.pattern.permute.xlu0 0
    %426 = vperm.xlu0 %425, %v423
    %v427 = vpop.permute.xlu0 %426
    %v429 = vlaneseq
    %v430 = vshrl.u32 %v429, 7
    %v431 = vsub.s32 0, %v430
    %v432 = vrot.slane %v427, %v431
    %v433 = vadd.f32 %v422, %v432
    %v434 = vsub.f32 0.0, %v433
    %v435 = vmul.f32 %v434, 1.442695
    %v436 = vpow.pop %v435
    %v437 = vadd.f32 %v436, 1.0
    %v438 = vrcp.pop %v437
    %vm439 = vcmask 122880
    %440 = vst.msk [vmem:[#allocation3] sm:$0x1] %vm439, %v438
    // Predicated region
    $region30: #{tpu_custom_call.1} parent=1 // pred_check
      _
    $region31: #{tpu_custom_call.1} parent=1 // pred_check_branch
      %442 = sbr.rel (0) target = $region33
    $region32: #{tpu_custom_call.1} parent=1 // pred_region
      %s444 = ssub.s32 16, 16
      %445 = vsyncadd [#allocation4], %s444
      %s447 = sshll.u32 [#allocation3], 4
      %s448 = int_to_ptr.vmem [resolvable:$true] %s447
      %450 = dma.vmem_to_hbm [thread:$0]  %s448, 16, %s7, [#allocation4]
    $region33: #{tpu_custom_call.1} parent=1 // pred_fallthru
      _
    // Predicated region
    $region34: #{tpu_custom_call.1} parent=1 // pred_check
      _
    $region35: #{tpu_custom_call.1} parent=1 // pred_check_branch
      %452 = sbr.rel (0) target = $region37
    $region36: #{tpu_custom_call.1} parent=1 // pred_region
      %453 = dma.done [#allocation4], 16
    $region37: #{tpu_custom_call.1} parent=1 // pred_fallthru
      _
    %454 = vsyncpa [#allocation4], 1

</llo_original>
